<compile_context>
chip_gen: v7x
topology: tpu7x:2x2x1
jax: 0.10.0
libtpu: 0.0.40
codegen_flags: <defaults>
</compile_context>

<pallas_src>
import jax
import jax.numpy as jnp
from jax.experimental import pallas as pl
from jax.experimental.pallas import tpu as pltpu


def _round_up(x, m):
    return ((x + m - 1) // m) * m


# --------------------------- kernels ---------------------------------------


def nconv_space_kernel(x_ref, k_ref, o_ref):
    # x_ref: (tm, D*C)   k_ref: (D*C, W*C)   o_ref: (tm, W*C)
    o_ref[...] = jnp.dot(
        x_ref[...], k_ref[...], preferred_element_type=jnp.float32
    ).astype(o_ref.dtype)


def nconv_time_kernel(x_ref, at_ref, o_ref):
    # x_ref: (tb, T, F)   at_ref: (tb, W, T) (A^T replicated)   o_ref: (tb, W, F)
    # y[b] = A^T @ x[b]  -> batched MXU matmul, no in-kernel transpose.
    o_ref[...] = jnp.einsum(
        "bwt,btf->bwf", at_ref[...], x_ref[...],
        preferred_element_type=jnp.float32,
    ).astype(o_ref.dtype)


# --------------------------- wrapper ----------------------------------------


def nconv_forward(x, a, *, gnn_type="space", tm=512, tb=8):
    """Pallas implementation of CrossGNN nconv.forward(x, A).

    x: [B, T, D, C] float array.
    a: [T, W] for gnn_type='time', [D, W] for gnn_type='space'.
    """
    B, T, D, C = x.shape

    if gnn_type == "time":
        W = a.shape[1]
        F = D * C
        x3 = x.reshape(B, T, F)                          # free reshape
        tb = max(1, min(tb, B))
        Bp = _round_up(B, tb)
        if Bp != B:
            x3 = jnp.pad(x3, ((0, Bp - B), (0, 0), (0, 0)))
        # A^T, replicated across the batch tile (tiny, grid-invariant).
        at = jnp.broadcast_to(a.T.astype(x.dtype)[None], (tb, W, T))
        grid = Bp // tb

        out = pl.pallas_call(
            nconv_time_kernel,
            out_shape=jax.ShapeDtypeStruct((Bp, W, F), x.dtype),
            grid_spec=pltpu.PrefetchScalarGridSpec(
                num_scalar_prefetch=0,
                grid=(grid,),
                in_specs=[
                    pl.BlockSpec((tb, T, F), lambda i: (i, 0, 0)),
                    pl.BlockSpec((tb, W, T), lambda i: (0, 0, 0)),
                ],
                out_specs=pl.BlockSpec((tb, W, F), lambda i: (i, 0, 0)),
            ),
            compiler_params=pltpu.CompilerParams(
                dimension_semantics=("parallel",)),
        )(x3, at)
        return out[:B].reshape(B, W, D, C)               # free reshape

    # ---- 'space' path: fold A into a (D*C, W*C) operator, single GEMM ------
    W = a.shape[1]
    M = B * T
    Fin, Fout = D * C, W * C

    k_op = jnp.einsum(
        "dw,ce->dcwe", a.astype(jnp.float32), jnp.eye(C, dtype=jnp.float32)
    ).reshape(Fin, Fout).astype(x.dtype)

    x2d = x.reshape(M, Fin)                              # free reshape
    Mp = _round_up(M, 8)
    if Mp != M:
        x2d = jnp.pad(x2d, ((0, Mp - M), (0, 0)))

    tm_eff = _round_up(max(8, min(tm, Mp)), 8)
    if Mp > 8 and Mp // tm_eff < 2:
        # keep grid length >= 2 so both v7x TensorCores get work
        tm_eff = max(8, _round_up(pl.cdiv(Mp, 2), 8))
    grid = pl.cdiv(Mp, tm_eff)

    out = pl.pallas_call(
        nconv_space_kernel,
        out_shape=jax.ShapeDtypeStruct((Mp, Fout), x.dtype),
        grid_spec=pltpu.PrefetchScalarGridSpec(
            num_scalar_prefetch=0,
            grid=(grid,),
            in_specs=[
                pl.BlockSpec((tm_eff, Fin), lambda i: (i, 0)),
                # K is grid-invariant -> resident across grid steps.
                pl.BlockSpec((Fin, Fout), lambda i: (0, 0)),
            ],
            out_specs=pl.BlockSpec((tm_eff, Fout), lambda i: (i, 0)),
        ),
        compiler_params=pltpu.CompilerParams(
            dimension_semantics=("parallel",)),
    )(x2d, k_op)
    return out[:M].reshape(B, T, W, C)                   # free reshape


# --------------------------- reference & demo -------------------------------


def nconv_reference(x, a, *, gnn_type="space"):
    if gnn_type == "time":
        return jnp.einsum("btdc,tw->bwdc", x, a)
    return jnp.einsum("btdc,dw->btwc", x, a)


if __name__ == "__main__":
    key = jax.random.PRNGKey(0)
    B, T, D, C = 2, 8, 7, 16      # batch, seq, nodes, channels

    k1, k2, k3 = jax.random.split(key, 3)
    x = jax.random.normal(k1, (B, T, D, C), dtype=jnp.float32)
    # row-stochastic adjacencies over the node ('space') and time axes
    a_space = jax.nn.softmax(jax.random.normal(k2, (D, D), dtype=jnp.float32), axis=-1)
    a_time = jax.nn.softmax(jax.random.normal(k3, (T, T), dtype=jnp.float32), axis=-1)

    for gnn_type, adj in (("space", a_space), ("time", a_time)):
        out = nconv_forward(x, adj, gnn_type=gnn_type)
        out = jax.block_until_ready(out)
        ref = nconv_reference(x, adj, gnn_type=gnn_type)
        assert out.shape == ref.shape, f"shape mismatch ({gnn_type})"
        assert jnp.allclose(out, ref, atol=1e-4, rtol=1e-4), f"mismatch ({gnn_type})"

    print("KERNEL_OK")
</pallas_src>

<mosaic_0001>
module attributes {stable_mosaic.version = 11 : i64} {
  func.func @nconv_space_kernel(%arg0: i32, %arg1: memref<8x112xf32, #tpu.memory_space<vmem>>, %arg2: memref<112x112xf32, #tpu.memory_space<vmem>>, %arg3: memref<8x112xf32, #tpu.memory_space<vmem>>) attributes {dimension_semantics = [#tpu.dimension_semantics<parallel>], iteration_bounds = array<i64: 2>, scalar_prefetch = 0 : i64, scratch_operands = 0 : i64, tpu.core_type = #tpu.core_type<tc>, window_params = [{transform_indices = @transform_0, window_bounds = array<i64: 8, 112>}, {pipeline_mode = #tpu.pipeline_mode<synchronous>, transform_indices = @transform_1, window_bounds = array<i64: 112, 112>}, {transform_indices = @transform_2, window_bounds = array<i64: 8, 112>}]} {
    %c0 = arith.constant 0 : index
    %c0_0 = arith.constant 0 : index
    %0 = vector.load %arg1[%c0, %c0_0] : memref<8x112xf32, #tpu.memory_space<vmem>>, vector<8x112xf32>
    %c0_1 = arith.constant 0 : index
    %c0_2 = arith.constant 0 : index
    %1 = vector.load %arg2[%c0_1, %c0_2] : memref<112x112xf32, #tpu.memory_space<vmem>>, vector<112x112xf32>
    %cst = arith.constant dense<0.000000e+00> : vector<8x112xf32>
    %2 = tpu.matmul %0, %1, %cst {dimension_numbers = #tpu.dot_dimension_numbers<[1], [0], [0], [1], [0, 0, 1, 1], [], []>} : vector<8x112xf32>, vector<112x112xf32>, vector<8x112xf32> -> vector<8x112xf32>
    %c0_3 = arith.constant 0 : index
    %c0_4 = arith.constant 0 : index
    %3 = vector.load %arg3[%c0_3, %c0_4] : memref<8x112xf32, #tpu.memory_space<vmem>>, vector<8x112xf32>
    tpu.vector_store %arg3[%c0_3, %c0_4], %2 {strides = array<i32>} : memref<8x112xf32, #tpu.memory_space<vmem>>, vector<8x112xf32>,
    return
  }
  func.func @transform_0(%arg0: i32) -> (i32, i32) {
    %c0_i32 = arith.constant 0 : i32
    %c0_i32_0 = arith.constant 0 : i32
    return %arg0, %c0_i32 : i32, i32
  }
  func.func @transform_1(%arg0: i32) -> (i32, i32) {
    %c0_i32 = arith.constant 0 : i32
    %c0_i32_0 = arith.constant 0 : i32
    %c0_i32_1 = arith.constant 0 : i32
    return %c0_i32, %c0_i32_0 : i32, i32
  }
  func.func @transform_2(%arg0: i32) -> (i32, i32) {
    %c0_i32 = arith.constant 0 : i32
    %c0_i32_0 = arith.constant 0 : i32
    return %arg0, %c0_i32 : i32, i32
  }
}

</mosaic_0001>

<llo_original>
// kernel: tpu_custom_call.1
$region0: #{tpu_custom_call.1}
  #allocation0 [shape = 'u32[]', space=smem, size = 0x4, offset = 0x4, fixed_abs, tag = 'smem constant byte address 0x4 - core index']
  #allocation1 [shape = 'u32[144,128]{1,0:T(1,128)}', space=vmem, size = 0x12000, scoped, tag = 'internal scratch']
  %s0 = inlined_call_operand.hbm [shape: f32[16,112], index: 0, kind: input, shape index: {}]
  %s1 = inlined_call_operand.hbm [shape: f32[112,112], index: 1, kind: input, shape index: {}]
  %s2 = inlined_call_operand.hbm [shape: f32[16,112], index: 2, kind: output, shape index: {}]
  %s3 = sld [smem:[#allocation0]]
  $region49: #{tpu_custom_call.1} parent=0
    _
  %s5 = ssub.s32 1, %s3
  %s6 = scalar_select 0, %s5, %s3
  $region1: #{tpu_custom_call.1} parent=0
    #allocation2 [shape = 'u8[8192]{0}', space=vmem, size = 0x2000, scoped, tag = 'input window, operand 0']
    #allocation3 [shape = 's32[2]{0}', space=sflag, size = 0x8, scoped, tag = 'scoped memory for tpu_custom_call.1']
    #allocation4 [shape = 's32[2]{0}', space=sflag, size = 0x8, scoped, tag = 'scoped memory for tpu_custom_call.1']
    #allocation5 [shape = 'u8[57344]{0}', space=vmem, size = 0xe000, scoped, tag = 'input window, operand 1, single buffered']
    #allocation6 [shape = 's32[1]{0}', space=sflag, size = 0x4, scoped, tag = 'scoped memory for tpu_custom_call.1']
    #allocation7 [shape = 'u8[8192]{0}', space=vmem, size = 0x2000, scoped, tag = 'output window, operand 0']
    %7 = vsyncpa [#allocation3], 0
    %s8 = scalar_lea.sflag [#allocation3], 1
    %9 = vsyncpa %s8, 0
    %10 = vsyncpa [#allocation6], 0
    %11 = vsyncpa [#allocation4], 0
    %s12 = scalar_lea.sflag [#allocation4], 1
    %13 = vsyncpa %s12, 0
    loop: start=0, step=1, limit=4
    $region2: #{tpu_custom_call.1} parent=1 // loop_pre_header
      _
    $region3: #{tpu_custom_call.1} parent=1 // loop_header
      %s15 = sphi 0, %s19
      %p16 = scmp.ge.s32.totalorder %s15, 4
      %s25 = sphi 0, %s27
      %s28 = sphi 0, %s25
      %s29 = sphi 0, %s28
      %s45 = sphi 0, %s29
      %s49 = sphi 0, %s49
      %s51 = sphi 0, %s49
      %s52 = sphi 0, %s51
      %s66 = sphi 0, %s52
      %s72 = sphi 0, %s74
      %s75 = sphi 0, %s72
      %s76 = sphi 0, %s75
      %s92 = sphi 0, %s76
    $region4: #{tpu_custom_call.1} parent=1 // loop_header_branch
      %18 = sbr.rel (%p16) target = $region8
    $region5: #{tpu_custom_call.1} parent=1 // loop_body
      %s20 = ssub.s32 %s15, 1
      %s21 = ssub.s32 %s15, 2
      %s22 = sadd.s32 %s15, 1
      %s23 = ssub.s32 %s15, %s22
      %p24 = scmp.eq.s32.totalorder %s23, 0
      %s26 = sadd.s32 %s25, 1
      %s27 = scalar_select %p24, %s25, %s26
      %p30 = pneg %p24
      %p31 = scmp.eq.s32.totalorder %s15, 1
      %p32 = por %p30, %p31
      %p33 = scmp.ne.s32.totalorder %s25, %s28
      %p34 = scmp.eq.s32.totalorder %s15, 0
      %p35 = por %p33, %p34
      %p36 = scmp.ne.s32.totalorder %s25, %s28
      %p37 = scmp.eq.s32.totalorder %s20, 1
      %p38 = por %p36, %p37
      %p39 = scmp.ne.s32.totalorder %s28, %s29
      %p40 = scmp.eq.s32.totalorder %s20, 0
      %p41 = por %p39, %p40
      %p42 = scmp.ne.s32.totalorder %s28, %s29
      %p43 = scmp.eq.s32.totalorder %s21, 1
      %p44 = por %p42, %p43
      %p46 = scmp.ne.s32.totalorder %s29, %s45
      %p47 = scmp.eq.s32.totalorder %s21, 0
      %p48 = por %p46, %p47
      %s50 = sadd.s32 %s49, 1
      %p53 = scmp.eq.s32.totalorder %s15, 1
      %p54 = scmp.ne.s32.totalorder %s49, %s51
      %p55 = scmp.eq.s32.totalorder %s15, 0
      %p56 = por %p54, %p55
      %p57 = scmp.ne.s32.totalorder %s49, %s51
      %p58 = scmp.eq.s32.totalorder %s20, 1
      %p59 = por %p57, %p58
      %p60 = scmp.ne.s32.totalorder %s51, %s52
      %p61 = scmp.eq.s32.totalorder %s20, 0
      %p62 = por %p60, %p61
      %p63 = scmp.ne.s32.totalorder %s51, %s52
      %p64 = scmp.eq.s32.totalorder %s21, 1
      %p65 = por %p63, %p64
      %p67 = scmp.ne.s32.totalorder %s52, %s66
      %p68 = scmp.eq.s32.totalorder %s21, 0
      %p69 = por %p67, %p68
      %s70 = ssub.s32 %s15, %s22
      %p71 = scmp.eq.s32.totalorder %s70, 0
      %s73 = sadd.s32 %s72, 1
      %s74 = scalar_select %p71, %s72, %s73
      %p77 = pneg %p71
      %p78 = scmp.eq.s32.totalorder %s15, 1
      %p79 = por %p77, %p78
      %p80 = scmp.ne.s32.totalorder %s72, %s75
      %p81 = scmp.eq.s32.totalorder %s15, 0
      %p82 = por %p80, %p81
      %p83 = scmp.ne.s32.totalorder %s72, %s75
      %p84 = scmp.eq.s32.totalorder %s20, 1
      %p85 = por %p83, %p84
      %p86 = scmp.ne.s32.totalorder %s75, %s76
      %p87 = scmp.eq.s32.totalorder %s20, 0
      %p88 = por %p86, %p87
      %p89 = scmp.ne.s32.totalorder %s75, %s76
      %p90 = scmp.eq.s32.totalorder %s21, 1
      %p91 = por %p89, %p90
      %p93 = scmp.ne.s32.totalorder %s76, %s92
      %p94 = scmp.eq.s32.totalorder %s21, 0
      %p95 = por %p93, %p94
      %p96 = scmp.le.s32.totalorder 1, %s15
      %p97 = scmp.lt.s32.totalorder %s15, 3
      %p98 = pnand %p96, %p97
      %p99 = pneg %p98
      // Predicated region
      $region9: #{tpu_custom_call.1} parent=5 // pred_check
        _
      $region10: #{tpu_custom_call.1} parent=5 // pred_check_branch
        %101 = sbr.rel (%p98) target = $region12
      $region11: #{tpu_custom_call.1} parent=5 // pred_region
        %s102 = ssub.s32 %s15, 1
        // Predicated region
        $region13: #{tpu_custom_call.1} parent=11 // pred_check
          %p103 = pneg %p62
        $region14: #{tpu_custom_call.1} parent=11 // pred_check_branch
          %105 = sbr.rel (%p103) target = $region16
        $region15: #{tpu_custom_call.1} parent=11 // pred_region
          %s107 = ssub.s32 1792, 1792
          %108 = vsyncadd [#allocation6], %s107
          %s109 = sshll.u32 [#allocation5], 4
          %s110 = int_to_ptr.vmem [resolvable:$true] %s109
          %115 = dma.hbm_to_vmem [thread:$0]  %s1, 1792, %s110, [#allocation6], 128, 128, 8
        $region16: #{tpu_custom_call.1} parent=11 // pred_fallthru
          _
      $region12: #{tpu_custom_call.1} parent=5 // pred_fallthru
        _
      %p116 = scmp.lt.s32.totalorder %s15, 2
      // Predicated region
      $region17: #{tpu_custom_call.1} parent=5 // pred_check
        %p117 = pneg %p116
      $region18: #{tpu_custom_call.1} parent=5 // pred_check_branch
        %119 = sbr.rel (%p117) target = $region20
      $region19: #{tpu_custom_call.1} parent=5 // pred_region
        // Predicated region
        $region21: #{tpu_custom_call.1} parent=19 // pred_check
          %p120 = pneg %p35
        $region22: #{tpu_custom_call.1} parent=19 // pred_check_branch
          %122 = sbr.rel (%p120) target = $region24
        $region23: #{tpu_custom_call.1} parent=19 // pred_region
          %s123 = sand.u32 %s25, 1
          %s124 = scalar_lea.sflag [#allocation3], %s123
          %s125 = sand.u32 %s25, 1
          %s126 = smul.addr %s125, 8
          %s127 = scalar_lea.vmem [#allocation2], %s126
          %s129 = ssub.s32 128, 128
          %130 = vsyncadd %s124, %s129
          %s131 = smul.addr %s15, 128
          %s132 = scalar_lea.hbm %s0, %s131
          %s134 = sshll.u32 %s127, 4
          %s135 = int_to_ptr.vmem [resolvable:$true] %s134
          %137 = dma.hbm_to_vmem [thread:$0]  %s132, 128, %s135, %s124
        $region24: #{tpu_custom_call.1} parent=19 // pred_fallthru
          _
      $region20: #{tpu_custom_call.1} parent=5 // pred_fallthru
        _
      %p138 = scmp.le.s32.totalorder 1, %s15
      %p139 = scmp.lt.s32.totalorder %s15, 3
      %p140 = pnand %p138, %p139
      %p141 = pneg %p140
      // Predicated region
      $region25: #{tpu_custom_call.1} parent=5 // pred_check
        _
      $region26: #{tpu_custom_call.1} parent=5 // pred_check_branch
        %143 = sbr.rel (%p140) target = $region28
      $region27: #{tpu_custom_call.1} parent=5 // pred_region
        %s144 = ssub.s32 %s15, 1
        %s145 = sand.u32 %s28, 1
        %s146 = scalar_lea.sflag [#allocation3], %s145
        %s147 = sand.u32 %s28, 1
        %s148 = smul.addr %s147, 8
        %s149 = scalar_lea.vmem [#allocation2], %s148
        // Predicated region
        $region29: #{tpu_custom_call.1} parent=27 // pred_check
          %p150 = pneg %p41
        $region30: #{tpu_custom_call.1} parent=27 // pred_check_branch
          %152 = sbr.rel (%p150) target = $region32
        $region31: #{tpu_custom_call.1} parent=27 // pred_region
          %153 = dma.done %s146, 128
        $region32: #{tpu_custom_call.1} parent=27 // pred_fallthru
          _
        // Predicated region
        $region33: #{tpu_custom_call.1} parent=27 // pred_check
          %p154 = pneg %p62
        $region34: #{tpu_custom_call.1} parent=27 // pred_check_branch
          %156 = sbr.rel (%p154) target = $region36
        $region35: #{tpu_custom_call.1} parent=27 // pred_region
          %157 = dma.done [#allocation6], 1792
        $region36: #{tpu_custom_call.1} parent=27 // pred_fallthru
          _
        %s158 = sand.u32 %s28, 1
        %s159 = scalar_lea.sflag [#allocation3], %s158
        %s160 = sand.u32 %s28, 1
        %s161 = smul.addr %s160, 8
        %s162 = scalar_lea.vmem [#allocation2], %s161
        %p163 = pneg %p41
        %p164 = pneg %p38
        %p165 = pneg %p62
        %p166 = pneg %p59
        %p167 = pneg %p88
        %p168 = pneg %p85
        %s169 = sand.u32 %s75, 1
        %s170 = scalar_lea.sflag [#allocation4], %s169
        %s171 = sand.u32 %s75, 1
        %s172 = smul.addr %s171, 8
        %s173 = scalar_lea.vmem [#allocation7], %s172
        %v174 = vld [vmem:[%s149] sm:$0xff]
        %v175 = vld [vmem:[#allocation5] sm:$0xff]
        %v176 = vld [vmem:[#allocation5 + $0x8] sm:$0xff]
        %v177 = vld [vmem:[#allocation5 + $0x10] sm:$0xff]
        %v178 = vld [vmem:[#allocation5 + $0x18] sm:$0xff]
        %v179 = vld [vmem:[#allocation5 + $0x20] sm:$0xff]
        %v180 = vld [vmem:[#allocation5 + $0x28] sm:$0xff]
        %v181 = vld [vmem:[#allocation5 + $0x30] sm:$0xff]
        %v182 = vld [vmem:[#allocation5 + $0x38] sm:$0xff]
        %v183 = vld [vmem:[#allocation5 + $0x40] sm:$0xff]
        %v184 = vld [vmem:[#allocation5 + $0x48] sm:$0xff]
        %v185 = vld [vmem:[#allocation5 + $0x50] sm:$0xff]
        %v186 = vld [vmem:[#allocation5 + $0x58] sm:$0xff]
        %v187 = vld [vmem:[#allocation5 + $0x60] sm:$0xff]
        %v188 = vld [vmem:[#allocation5 + $0x68] sm:$0xff]
        %vm189 = vcmask 916480
        %v191 = vsel %vm189, %v174, 0
        %193 = vmatprep.subr.mxu0 0.0
        %194 = vmatpush1.msra.mxu0 %v175
        %195 = vmatprep.subr.mxu0 0.0
        %196 = vmatpush1.msra.mxu0 %v176
        %197 = vmatprep.subr.mxu0 0.0
        %198 = vmatpush1.msra.mxu0 %v177
        %199 = vmatprep.subr.mxu0 0.0
        %200 = vmatpush1.msra.mxu0 %v178
        %201 = vmatprep.subr.mxu0 0.0
        %202 = vmatpush1.msra.mxu0 %v179
        %203 = vmatprep.subr.mxu0 0.0
        %204 = vmatpush1.msra.mxu0 %v180
        %205 = vmatprep.subr.mxu0 0.0
        %206 = vmatpush1.msra.mxu0 %v181
        %207 = vmatprep.subr.mxu0 0.0
        %208 = vmatpush1.msra.mxu0 %v182
        %209 = vmatprep.subr.mxu0 0.0
        %210 = vmatpush1.msra.mxu0 %v183
        %211 = vmatprep.subr.mxu0 0.0
        %212 = vmatpush1.msra.mxu0 %v184
        %213 = vmatprep.subr.mxu0 0.0
        %214 = vmatpush1.msra.mxu0 %v185
        %215 = vmatprep.subr.mxu0 0.0
        %216 = vmatpush1.msra.mxu0 %v186
        %217 = vmatprep.subr.mxu0 0.0
        %218 = vmatpush1.msra.mxu0 %v187
        %219 = vmatprep.subr.mxu0 0.0
        %220 = vmatpush1.msra.mxu0 %v188
        %221 = vmatprep.subr.mxu0 0.0
        %222 = vmatpush1.msra.mxu0 0.0
        %223 = vmatprep.subr.mxu0 0.0
        %224 = vmatpush1.msra.mxu0 0.0
        %225 = vmatprep.subr.mxu0 0.0
        %226 = vmatpush1.msra.mxu0 0.0
        %227 = vmatprep.subr.mxu0 0.0
        %228 = vmatpush1.msra.mxu0 0.0
        %229 = vmatprep.subr.mxu0 0.0
        %230 = vmatpush1.msra.mxu0 0.0
        %231 = vmatprep.subr.mxu0 0.0
        %232 = vmatpush1.msra.mxu0 0.0
        %233 = vmatprep.subr.mxu0 0.0
        %234 = vmatpush1.msra.mxu0 0.0
        %235 = vmatprep.subr.mxu0 0.0
        %236 = vmatpush1.msra.mxu0 0.0
        %237 = vmatprep.subr.mxu0 0.0
        %238 = vmatpush1.msra.mxu0 0.0
        %239 = vmatprep.subr.mxu0 0.0
        %240 = vmatpush1.msra.mxu0 0.0
        %241 = vmatprep.subr.mxu0 0.0
        %242 = vmatpush1.msra.mxu0 0.0
        %243 = vmatprep.subr.mxu0 0.0
        %244 = vmatpush1.msra.mxu0 0.0
        %245 = vmatprep.subr.mxu0 0.0
        %246 = vmatpush1.msra.mxu0 0.0
        %247 = vmatprep.subr.mxu0 0.0
        %248 = vmatpush1.msra.mxu0 0.0
        %249 = vmatprep.subr.mxu0 0.0
        %250 = vmatpush1.msra.mxu0 0.0
        %251 = vmatprep.subr.mxu0 0.0
        %252 = vmatpush1.msra.mxu0 0.0
        %253 = vmatprep.subr.mxu0 0.0
        %254 = vmatpush1.msra.mxu0 0.0
        %255 = vmatprep.subr.mxu0 0.0
        %256 = vmatpush1.msra.mxu0 0.0
        %257 = vmatprep.mubr.f32.mxu0 0.0
        %258 = vmatmul.mubr.f32.gmra.mrb[0].mxu0 %v191
        %v259 = vpop.f32.mrb[0].mxu0
        %v260 = vadd.f32 0.0, %v259
        %v261 = vpop.f32.mrb[0].mxu0
        %262 = vdwg.mxu0
        %263 = vst.msk [vmem:[%s173] sm:$0xff] %vm189, %v260
        %s264 = sand.u32 %s75, 1
        %s265 = scalar_lea.sflag [#allocation4], %s264
        %s266 = sand.u32 %s75, 1
        %s267 = smul.addr %s266, 8
        %s268 = scalar_lea.vmem [#allocation7], %s267
        // Predicated region
        $region37: #{tpu_custom_call.1} parent=27 // pred_check
          %p269 = pneg %p85
        $region38: #{tpu_custom_call.1} parent=27 // pred_check_branch
          %271 = sbr.rel (%p269) target = $region40
        $region39: #{tpu_custom_call.1} parent=27 // pred_region
          %s273 = ssub.s32 128, 128
          %274 = vsyncadd %s265, %s273
          %s275 = smul.addr %s20, 128
          %s276 = scalar_lea.hbm %s2, %s275
          %s278 = sshll.u32 %s268, 4
          %s279 = int_to_ptr.vmem [resolvable:$true] %s278
          %281 = dma.vmem_to_hbm [thread:$0]  %s279, 128, %s276, %s265
        $region40: #{tpu_custom_call.1} parent=27 // pred_fallthru
          _
      $region28: #{tpu_custom_call.1} parent=5 // pred_fallthru
        _
      %p282 = scmp.le.s32.totalorder 2, %s15
      // Predicated region
      $region41: #{tpu_custom_call.1} parent=5 // pred_check
        %p283 = pneg %p282
      $region42: #{tpu_custom_call.1} parent=5 // pred_check_branch
        %285 = sbr.rel (%p283) target = $region44
      $region43: #{tpu_custom_call.1} parent=5 // pred_region
        %s286 = ssub.s32 %s15, 2
        // Predicated region
        $region45: #{tpu_custom_call.1} parent=43 // pred_check
          %p287 = pneg %p91
        $region46: #{tpu_custom_call.1} parent=43 // pred_check_branch
          %289 = sbr.rel (%p287) target = $region48
        $region47: #{tpu_custom_call.1} parent=43 // pred_region
          %s290 = sand.u32 %s76, 1
          %s291 = scalar_lea.sflag [#allocation4], %s290
          %s292 = sand.u32 %s76, 1
          %s293 = smul.addr %s292, 8
          %s294 = scalar_lea.vmem [#allocation7], %s293
          %295 = dma.done %s291, 128
        $region48: #{tpu_custom_call.1} parent=43 // pred_fallthru
          _
      $region44: #{tpu_custom_call.1} parent=5 // pred_fallthru
        _
    $region6: #{tpu_custom_call.1} parent=1 // loop_footer
      %s19 = sadd.s32 1, %s15
    $region7: #{tpu_custom_call.1} parent=1 // loop_footer_branch
      %14 = sbr.rel target = $region3
    $region8: #{tpu_custom_call.1} parent=1 // loop_exit
      _
    %296 = vsyncpa [#allocation3], 1
    %s297 = scalar_lea.sflag [#allocation3], 1
    %298 = vsyncpa %s297, 1
    %299 = vsyncpa [#allocation6], 1
    %300 = vsyncpa [#allocation4], 1
    %s301 = scalar_lea.sflag [#allocation4], 1
    %302 = vsyncpa %s301, 1

</llo_original>
